<compile_context>
chip_gen: v5e
topology: v5e:2x2
jax: 0.10.0
libtpu: 0.0.40
codegen_flags: <defaults>
</compile_context>

<pallas_src>
import functools

import jax
import jax.numpy as jnp
from jax.experimental import pallas as pl
from jax.experimental.pallas import tpu as pltpu


def _round_up(n, m):
    return (n + m - 1) // m * m


def _pick_tk(mid):
    # Largest multiple-of-128 divisor of mid that keeps the streamed W2 tile
    # small (<= 4 MiB bf16 at tk=512) while giving at least 2 pipeline steps
    # when the hidden dim allows it.
    for cand in (512, 256, 128):
        if mid % cand == 0 and mid // cand >= 2:
            return cand
    return mid  # tiny / non-128-divisible hidden dim: keep it whole (resident)


def _mlp_kernel(x_ref, w1_ref, b1_ref, w2_ref, b2_ref, w3_ref, b3_ref,
                o_ref, h2_acc):
    # Grid: (row_tiles, mid_tiles).  Along axis 1 we stream column tiles of W1
    # / row tiles of W2 and accumulate h2 in f32; finalize on the last step.
    j = pl.program_id(1)
    nj = pl.num_programs(1)

    @pl.when(j == 0)
    def _():
        h2_acc[...] = jnp.zeros_like(h2_acc)

    x = x_ref[...]  # native dtype (bf16 hits the fast MXU path on v6e/v7x)

    # h1 column tile j:  (tm, tk)
    h1 = jnp.dot(x, w1_ref[...], preferred_element_type=jnp.float32)
    h1 = jnp.maximum(h1 + b1_ref[...].astype(jnp.float32), 0.0)  # ReLU

    # Accumulate h2 over the hidden-dim tiles:  (tm, mid)
    h2_acc[...] += jnp.dot(h1.astype(w2_ref.dtype), w2_ref[...],
                           preferred_element_type=jnp.float32)

    @pl.when(j == nj - 1)
    def _():
        h2 = jnp.maximum(h2_acc[...] + b2_ref[...].astype(jnp.float32), 0.0)  # ReLU
        out = jnp.dot(h2.astype(w3_ref.dtype), w3_ref[...],
                      preferred_element_type=jnp.float32)
        o_ref[...] = (out + b3_ref[...].astype(jnp.float32)).astype(o_ref.dtype)


@functools.partial(jax.jit, static_argnames=("tm", "tk"))
def audio_mlp_pallas(x, w1, b1, w2, b2, w3, b3, *, tm=None, tk=None):
    B, in_dim = x.shape
    mid = w1.shape[1]
    out_dim = w3.shape[1]

    if tm is None:
        # 256-row tiles saturate the MXU on v5e (4x128^2) and v6e/v7x (2x256^2).
        # Small batches collapse to a single padded tile (multiple of 8 sublanes).
        tm = min(256, _round_up(B, 8))
    if tk is None:
        tk = _pick_tk(mid)
    assert mid % tk == 0, "hidden-dim tile must divide middle_dim"

    B_pad = _round_up(B, tm)
    if B_pad != B:
        x = jnp.pad(x, ((0, B_pad - B), (0, 0)))

    grid = (B_pad // tm, mid // tk)

    itemsize = x.dtype.itemsize
    weight_bytes = sum(int(a.size) * a.dtype.itemsize
                       for a in (w1, b1, w2, b2, w3, b3))
    flops = 2 * B_pad * (in_dim * mid + mid * mid + mid * out_dim)
    bytes_accessed = (B_pad * (in_dim + out_dim) * itemsize
                      + grid[0] * weight_bytes)

    # Explicit VMEM budget: double-buffered streamed tiles + f32 accumulator.
    vmem_needed = (
        2 * tm * in_dim * itemsize                 # x tiles
        + 2 * in_dim * tk * w1.dtype.itemsize      # W1 column tiles
        + 2 * tk * mid * w2.dtype.itemsize         # W2 row tiles (streamed)
        + 2 * mid * out_dim * w3.dtype.itemsize    # W3 (resident, 2-buf budget)
        + 2 * tm * out_dim * itemsize              # out tiles
        + 2 * (tk + mid + out_dim) * 4             # biases
        + tm * mid * 4                             # h2 f32 accumulator scratch
        + tm * tk * 4                              # h1 tile live range headroom
    )
    vmem_limit = min(128 * 1024 * 1024,
                     max(32 * 1024 * 1024, int(vmem_needed * 5 // 4)))

    out = pl.pallas_call(
        _mlp_kernel,
        out_shape=jax.ShapeDtypeStruct((B_pad, out_dim), x.dtype),
        grid_spec=pltpu.PrefetchScalarGridSpec(
            num_scalar_prefetch=0,
            grid=grid,
            in_specs=[
                pl.BlockSpec((tm, in_dim), lambda i, j: (i, 0)),    # x tile
                pl.BlockSpec((in_dim, tk), lambda i, j: (0, j)),    # W1 col tile
                pl.BlockSpec((1, tk), lambda i, j: (0, j)),         # b1 tile
                pl.BlockSpec((tk, mid), lambda i, j: (j, 0)),       # W2 row tile
                pl.BlockSpec((1, mid), lambda i, j: (0, 0)),        # b2
                pl.BlockSpec((mid, out_dim), lambda i, j: (0, 0)),  # W3 (resident)
                pl.BlockSpec((1, out_dim), lambda i, j: (0, 0)),    # b3
            ],
            out_specs=pl.BlockSpec((tm, out_dim), lambda i, j: (i, 0)),
            scratch_shapes=[pltpu.VMEM((tm, mid), jnp.float32)],    # h2 accumulator
        ),
        compiler_params=pltpu.CompilerParams(
            dimension_semantics=("parallel", "arbitrary"),
            vmem_limit_bytes=vmem_limit,
        ),
        cost_estimate=pl.CostEstimate(
            flops=flops, transcendentals=0, bytes_accessed=bytes_accessed),
    )(x, w1, b1, w2, b2, w3, b3)

    return out[:B] if B_pad != B else out


def _reference(x, w1, b1, w2, b2, w3, b3):
    # Same dtype semantics as the kernel: native-dtype matmul inputs, f32 accumulate.
    h1 = jnp.dot(x, w1, preferred_element_type=jnp.float32) + b1.astype(jnp.float32)
    h1 = jnp.maximum(h1, 0.0)
    h2 = jnp.dot(h1.astype(w2.dtype), w2,
                 preferred_element_type=jnp.float32) + b2.astype(jnp.float32)
    h2 = jnp.maximum(h2, 0.0)
    out = jnp.dot(h2.astype(w3.dtype), w3,
                  preferred_element_type=jnp.float32) + b3.astype(jnp.float32)
    return out.astype(x.dtype)


if __name__ == "__main__":
    # Small shapes consistent with the module's forward (x: (B, in_dim)).
    # middle_dim scaled down from 4096 -> 256 (still exercises 2 hidden-dim tiles).
    B, IN_DIM, MID_DIM, OUT_DIM = 16, 128, 256, 256

    key = jax.random.PRNGKey(0)
    kx, k1, k2, k3, k4, k5, k6, kx2 = jax.random.split(key, 8)

    # bf16 activations/weights (MXU-native on v6e/v7x), f32 biases added on the
    # f32 accumulator.
    x = jax.random.normal(kx, (B, IN_DIM), dtype=jnp.float32).astype(jnp.bfloat16)
    w1 = (jax.random.normal(k1, (IN_DIM, MID_DIM), jnp.float32)
          * (1.0 / IN_DIM ** 0.5)).astype(jnp.bfloat16)
    b1 = jax.random.normal(k2, (1, MID_DIM), jnp.float32) * 0.01
    w2 = (jax.random.normal(k3, (MID_DIM, MID_DIM), jnp.float32)
          * (1.0 / MID_DIM ** 0.5)).astype(jnp.bfloat16)
    b2 = jax.random.normal(k4, (1, MID_DIM), jnp.float32) * 0.01
    w3 = (jax.random.normal(k5, (MID_DIM, OUT_DIM), jnp.float32)
          * (1.0 / MID_DIM ** 0.5)).astype(jnp.bfloat16)
    b3 = jax.random.normal(k6, (1, OUT_DIM), jnp.float32) * 0.01

    out = jax.block_until_ready(audio_mlp_pallas(x, w1, b1, w2, b2, w3, b3))
    ref = _reference(x, w1, b1, w2, b2, w3, b3)
    assert out.shape == (B, OUT_DIM)
    assert jnp.allclose(out.astype(jnp.float32), ref.astype(jnp.float32),
                        atol=5e-2, rtol=5e-2), "mismatch vs reference"

    # Padding path: batch not divisible by the chosen tile.
    x2 = jax.random.normal(kx2, (20, IN_DIM), jnp.float32).astype(jnp.bfloat16)
    out2 = jax.block_until_ready(audio_mlp_pallas(x2, w1, b1, w2, b2, w3, b3))
    ref2 = _reference(x2, w1, b1, w2, b2, w3, b3)
    assert out2.shape == (20, OUT_DIM)
    assert jnp.allclose(out2.astype(jnp.float32), ref2.astype(jnp.float32),
                        atol=5e-2, rtol=5e-2), "mismatch vs reference (padded batch)"

    # Single-mid-tile path (tk == mid) also supported.
    out3 = jax.block_until_ready(
        audio_mlp_pallas(x, w1, b1, w2, b2, w3, b3, tk=MID_DIM))
    assert jnp.allclose(out3.astype(jnp.float32), ref.astype(jnp.float32),
                        atol=5e-2, rtol=5e-2), "mismatch vs reference (tk=mid)"

    print("KERNEL_OK")
</pallas_src>

<mosaic_0001>
module attributes {stable_mosaic.version = 11 : i64} {
  func.func @_mlp_kernel(%arg0: i32, %arg1: i32, %arg2: memref<16x128xbf16, #tpu.memory_space<vmem>>, %arg3: memref<128x128xbf16, #tpu.memory_space<vmem>>, %arg4: memref<1x128xf32, #tpu.memory_space<vmem>>, %arg5: memref<128x256xbf16, #tpu.memory_space<vmem>>, %arg6: memref<1x256xf32, #tpu.memory_space<vmem>>, %arg7: memref<256x256xbf16, #tpu.memory_space<vmem>>, %arg8: memref<1x256xf32, #tpu.memory_space<vmem>>, %arg9: memref<16x256xbf16, #tpu.memory_space<vmem>>, %arg10: memref<16x256xf32, #tpu.memory_space<vmem>>) attributes {dimension_semantics = [#tpu.dimension_semantics<parallel>, #tpu.dimension_semantics<arbitrary>], iteration_bounds = array<i64: 1, 2>, scalar_prefetch = 0 : i64, scratch_operands = 1 : i64, tpu.core_type = #tpu.core_type<tc>, window_params = [{transform_indices = @transform_0, window_bounds = array<i64: 16, 128>}, {transform_indices = @transform_1, window_bounds = array<i64: 128, 128>}, {transform_indices = @transform_2, window_bounds = array<i64: 1, 128>}, {transform_indices = @transform_3, window_bounds = array<i64: 128, 256>}, {pipeline_mode = #tpu.pipeline_mode<synchronous>, transform_indices = @transform_4, window_bounds = array<i64: 1, 256>}, {pipeline_mode = #tpu.pipeline_mode<synchronous>, transform_indices = @transform_5, window_bounds = array<i64: 256, 256>}, {pipeline_mode = #tpu.pipeline_mode<synchronous>, transform_indices = @transform_6, window_bounds = array<i64: 1, 256>}, {transform_indices = @transform_7, window_bounds = array<i64: 16, 256>}]} {
    %c0_i32 = arith.constant 0 : i32
    %0 = arith.cmpi eq, %arg1, %c0_i32 : i32
    %1 = arith.extui %0 : i1 to i32
    %c0_i32_0 = arith.constant 0 : i32
    %2 = arith.cmpi ne, %1, %c0_i32_0 : i32
    scf.if %2 {
      %cst_15 = arith.constant 0.000000e+00 : f32
      %20 = vector.broadcast %cst_15 : f32 to vector<16x256xf32>
      %c0_16 = arith.constant 0 : index
      %c0_17 = arith.constant 0 : index
      %21 = vector.load %arg10[%c0_16, %c0_17] : memref<16x256xf32, #tpu.memory_space<vmem>>, vector<16x256xf32>
      tpu.vector_store %arg10[%c0_16, %c0_17], %20 {strides = array<i32>} : memref<16x256xf32, #tpu.memory_space<vmem>>, vector<16x256xf32>,
    } else {
    }
    %c0 = arith.constant 0 : index
    %c0_1 = arith.constant 0 : index
    %3 = vector.load %arg2[%c0, %c0_1] : memref<16x128xbf16, #tpu.memory_space<vmem>>, vector<16x128xbf16>
    %c0_2 = arith.constant 0 : index
    %c0_3 = arith.constant 0 : index
    %4 = vector.load %arg3[%c0_2, %c0_3] : memref<128x128xbf16, #tpu.memory_space<vmem>>, vector<128x128xbf16>
    %cst = arith.constant dense<0.000000e+00> : vector<16x128xf32>
    %5 = tpu.matmul %3, %4, %cst {dimension_numbers = #tpu.dot_dimension_numbers<[1], [0], [0], [1], [0, 0, 1, 1], [], []>} : vector<16x128xbf16>, vector<128x128xbf16>, vector<16x128xf32> -> vector<16x128xf32>
    %c0_4 = arith.constant 0 : index
    %c0_5 = arith.constant 0 : index
    %6 = vector.load %arg4[%c0_4, %c0_5] : memref<1x128xf32, #tpu.memory_space<vmem>>, vector<1x128xf32>
    %7 = vector.broadcast %6 : vector<1x128xf32> to vector<16x128xf32>
    %8 = arith.addf %5, %7 : vector<16x128xf32>
    %cst_6 = arith.constant 0.000000e+00 : f32
    %9 = vector.broadcast %cst_6 : f32 to vector<16x128xf32>
    %10 = arith.maximumf %8, %9 : vector<16x128xf32>
    %c0_7 = arith.constant 0 : index
    %c0_8 = arith.constant 0 : index
    %11 = vector.load %arg10[%c0_7, %c0_8] : memref<16x256xf32, #tpu.memory_space<vmem>>, vector<16x256xf32>
    %12 = arith.truncf %10 : vector<16x128xf32> to vector<16x128xbf16>
    %c0_9 = arith.constant 0 : index
    %c0_10 = arith.constant 0 : index
    %13 = vector.load %arg5[%c0_9, %c0_10] : memref<128x256xbf16, #tpu.memory_space<vmem>>, vector<128x256xbf16>
    %cst_11 = arith.constant dense<0.000000e+00> : vector<16x256xf32>
    %14 = tpu.matmul %12, %13, %cst_11 {dimension_numbers = #tpu.dot_dimension_numbers<[1], [0], [0], [1], [0, 0, 1, 1], [], []>} : vector<16x128xbf16>, vector<128x256xbf16>, vector<16x256xf32> -> vector<16x256xf32>
    %15 = arith.addf %11, %14 : vector<16x256xf32>
    %c0_12 = arith.constant 0 : index
    %c0_13 = arith.constant 0 : index
    %16 = vector.load %arg10[%c0_12, %c0_13] : memref<16x256xf32, #tpu.memory_space<vmem>>, vector<16x256xf32>
    tpu.vector_store %arg10[%c0_12, %c0_13], %15 {strides = array<i32>} : memref<16x256xf32, #tpu.memory_space<vmem>>, vector<16x256xf32>,
    %c1_i32 = arith.constant 1 : i32
    %17 = arith.cmpi eq, %arg1, %c1_i32 : i32
    %18 = arith.extui %17 : i1 to i32
    %c0_i32_14 = arith.constant 0 : i32
    %19 = arith.cmpi ne, %18, %c0_i32_14 : i32
    scf.if %19 {
      %c0_15 = arith.constant 0 : index
      %c0_16 = arith.constant 0 : index
      %20 = vector.load %arg10[%c0_15, %c0_16] : memref<16x256xf32, #tpu.memory_space<vmem>>, vector<16x256xf32>
      %c0_17 = arith.constant 0 : index
      %c0_18 = arith.constant 0 : index
      %21 = vector.load %arg6[%c0_17, %c0_18] : memref<1x256xf32, #tpu.memory_space<vmem>>, vector<1x256xf32>
      %22 = vector.broadcast %21 : vector<1x256xf32> to vector<16x256xf32>
      %23 = arith.addf %20, %22 : vector<16x256xf32>
      %cst_19 = arith.constant 0.000000e+00 : f32
      %24 = vector.broadcast %cst_19 : f32 to vector<16x256xf32>
      %25 = arith.maximumf %23, %24 : vector<16x256xf32>
      %26 = arith.truncf %25 : vector<16x256xf32> to vector<16x256xbf16>
      %c0_20 = arith.constant 0 : index
      %c0_21 = arith.constant 0 : index
      %27 = vector.load %arg7[%c0_20, %c0_21] : memref<256x256xbf16, #tpu.memory_space<vmem>>, vector<256x256xbf16>
      %cst_22 = arith.constant dense<0.000000e+00> : vector<16x256xf32>
      %28 = tpu.matmul %26, %27, %cst_22 {dimension_numbers = #tpu.dot_dimension_numbers<[1], [0], [0], [1], [0, 0, 1, 1], [], []>} : vector<16x256xbf16>, vector<256x256xbf16>, vector<16x256xf32> -> vector<16x256xf32>
      %c0_23 = arith.constant 0 : index
      %c0_24 = arith.constant 0 : index
      %29 = vector.load %arg8[%c0_23, %c0_24] : memref<1x256xf32, #tpu.memory_space<vmem>>, vector<1x256xf32>
      %30 = vector.broadcast %29 : vector<1x256xf32> to vector<16x256xf32>
      %31 = arith.addf %28, %30 : vector<16x256xf32>
      %32 = arith.truncf %31 : vector<16x256xf32> to vector<16x256xbf16>
      %c0_25 = arith.constant 0 : index
      %c0_26 = arith.constant 0 : index
      %33 = vector.load %arg9[%c0_25, %c0_26] : memref<16x256xbf16, #tpu.memory_space<vmem>>, vector<16x256xbf16>
      tpu.vector_store %arg9[%c0_25, %c0_26], %32 {strides = array<i32>} : memref<16x256xbf16, #tpu.memory_space<vmem>>, vector<16x256xbf16>,
    } else {
    }
    return
  }
  func.func @transform_0(%arg0: i32, %arg1: i32) -> (i32, i32) {
    %c0_i32 = arith.constant 0 : i32
    %c0_i32_0 = arith.constant 0 : i32
    return %arg0, %c0_i32 : i32, i32
  }
  func.func @transform_1(%arg0: i32, %arg1: i32) -> (i32, i32) {
    %c0_i32 = arith.constant 0 : i32
    %c0_i32_0 = arith.constant 0 : i32
    return %c0_i32, %arg1 : i32, i32
  }
  func.func @transform_2(%arg0: i32, %arg1: i32) -> (i32, i32) {
    %c0_i32 = arith.constant 0 : i32
    %c0_i32_0 = arith.constant 0 : i32
    return %c0_i32, %arg1 : i32, i32
  }
  func.func @transform_3(%arg0: i32, %arg1: i32) -> (i32, i32) {
    %c0_i32 = arith.constant 0 : i32
    %c0_i32_0 = arith.constant 0 : i32
    return %arg1, %c0_i32 : i32, i32
  }
  func.func @transform_4(%arg0: i32, %arg1: i32) -> (i32, i32) {
    %c0_i32 = arith.constant 0 : i32
    %c0_i32_0 = arith.constant 0 : i32
    %c0_i32_1 = arith.constant 0 : i32
    return %c0_i32, %c0_i32_0 : i32, i32
  }
  func.func @transform_5(%arg0: i32, %arg1: i32) -> (i32, i32) {
    %c0_i32 = arith.constant 0 : i32
    %c0_i32_0 = arith.constant 0 : i32
    %c0_i32_1 = arith.constant 0 : i32
    return %c0_i32, %c0_i32_0 : i32, i32
  }
  func.func @transform_6(%arg0: i32, %arg1: i32) -> (i32, i32) {
    %c0_i32 = arith.constant 0 : i32
    %c0_i32_0 = arith.constant 0 : i32
    %c0_i32_1 = arith.constant 0 : i32
    return %c0_i32, %c0_i32_0 : i32, i32
  }
  func.func @transform_7(%arg0: i32, %arg1: i32) -> (i32, i32) {
    %c0_i32 = arith.constant 0 : i32
    %c0_i32_0 = arith.constant 0 : i32
    return %arg0, %c0_i32 : i32, i32
  }
}

</mosaic_0001>

<llo_original>
// kernel: audio_mlp_pallas.1
$region0: #{audio_mlp_pallas.1}
  #allocation0 [shape = 'u32[]', space=smem, size = 0x4, offset = 0x4, fixed_abs, tag = 'smem constant byte address 0x4 - core index']
  #allocation1 [shape = 'u32[72,128]{1,0:T(1,128)}', space=vmem, size = 0x9000, scoped, tag = 'internal scratch']
  #allocation2 [shape = 'f32[16,256]{1,0:T(8,128)}', space=vmem, size = 0x4000, scoped, tag = 'scratch operand']
  %s0 = inlined_call_operand.hbm [shape: bf16[16,128], index: 0, kind: input, shape index: {}]
  %s1 = inlined_call_operand.hbm [shape: bf16[128,256], index: 1, kind: input, shape index: {}]
  %s2 = inlined_call_operand.hbm [shape: f32[1,256], index: 2, kind: input, shape index: {}]
  %s3 = inlined_call_operand.hbm [shape: bf16[256,256], index: 3, kind: input, shape index: {}]
  %s4 = inlined_call_operand.vmem [shape: f32[1,256], index: 4, kind: input, shape index: {}]
  %s5 = inlined_call_operand.hbm [shape: bf16[256,256], index: 5, kind: input, shape index: {}]
  %s6 = inlined_call_operand.vmem [shape: f32[1,256], index: 6, kind: input, shape index: {}]
  %s7 = inlined_call_operand.hbm [shape: bf16[16,256], index: 7, kind: output, shape index: {}]
  %s8 = sld [smem:[#allocation0]]
  $region89: #{audio_mlp_pallas.1} parent=0
    _
  %s10 = ssub.s32 1, %s8
  %s11 = scalar_select 0, %s10, %s8
  $region1: #{audio_mlp_pallas.1} parent=0
    #allocation3 [shape = 'u8[4096]{0}', space=vmem, size = 0x1000, scoped, tag = 'input window, operand 0, single buffered']
    #allocation4 [shape = 's32[2]{0}', space=sflag, size = 0x8, scoped, tag = 'scoped memory for audio_mlp_pallas.1']
    #allocation5 [shape = 's32[2]{0}', space=sflag, size = 0x8, scoped, tag = 'scoped memory for audio_mlp_pallas.1']
    #allocation6 [shape = 'u8[65536]{0}', space=vmem, size = 0x10000, scoped, tag = 'input window, operand 1']
    #allocation7 [shape = 's32[2]{0}', space=sflag, size = 0x8, scoped, tag = 'scoped memory for audio_mlp_pallas.1']
    #allocation8 [shape = 'u8[1024]{0}', space=vmem, size = 0x400, scoped, tag = 'input window, operand 2']
    #allocation9 [shape = 'u8[131072]{0}', space=vmem, size = 0x20000, scoped, tag = 'input window, operand 3']
    #allocation10 [shape = 's32[2]{0}', space=sflag, size = 0x8, scoped, tag = 'scoped memory for audio_mlp_pallas.1']
    #allocation11 [shape = 'u8[131072]{0}', space=vmem, size = 0x20000, scoped, tag = 'input window, operand 5, single buffered']
    #allocation12 [shape = 'u8[8192]{0}', space=vmem, size = 0x2000, scoped, tag = 'output window, operand 0, single buffered']
    %12 = vsyncpa [#allocation4], 0
    %13 = vsyncpa [#allocation7], 0
    %s14 = scalar_lea.sflag [#allocation7], 1
    %15 = vsyncpa %s14, 0
    %16 = vsyncpa [#allocation10], 0
    %s17 = scalar_lea.sflag [#allocation10], 1
    %18 = vsyncpa %s17, 0
    %19 = vsyncpa [#allocation5], 0
    loop: start=0, step=1, limit=4
    $region2: #{audio_mlp_pallas.1} parent=1 // loop_pre_header
      _
    $region3: #{audio_mlp_pallas.1} parent=1 // loop_header
      %s21 = sphi 0, %s25
      %p22 = scmp.ge.s32.totalorder %s21, 4
      %s28 = sphi 0, %s40
      %s29 = sphi 0, %s36
      %s30 = sphi 0, %s28
      %s31 = sphi 0, %s29
      %s32 = sphi 0, %s30
      %s33 = sphi 0, %s31
      %s43 = sphi 0, %s45
      %s46 = sphi 0, %s43
      %s47 = sphi 0, %s46
      %s63 = sphi 0, %s47
      %s69 = sphi 0, %s71
      %s72 = sphi 0, %s69
      %s73 = sphi 0, %s72
      %s89 = sphi 0, %s73
      %s95 = sphi 0, %s97
      %s98 = sphi 0, %s95
      %s99 = sphi 0, %s98
      %s115 = sphi 0, %s99
      %s121 = sphi 0, %s123
      %s124 = sphi 0, %s121
      %s125 = sphi 0, %s124
      %s141 = sphi 0, %s125
      %s145 = sphi 0, %s145
      %s147 = sphi 0, %s145
      %s148 = sphi 0, %s147
      %s162 = sphi 0, %s148
      %s166 = sphi 0, %s166
      %s168 = sphi 0, %s166
      %s169 = sphi 0, %s168
      %s183 = sphi 0, %s169
      %s187 = sphi 0, %s187
      %s189 = sphi 0, %s187
      %s190 = sphi 0, %s189
      %s204 = sphi 0, %s190
      %s210 = sphi 0, %s212
      %s213 = sphi 0, %s210
      %s214 = sphi 0, %s213
      %s230 = sphi 0, %s214
    $region4: #{audio_mlp_pallas.1} parent=1 // loop_header_branch
      %24 = sbr.rel (%p22) target = $region8
    $region5: #{audio_mlp_pallas.1} parent=1 // loop_body
      %s26 = ssub.s32 %s21, 1
      %s27 = ssub.s32 %s21, 2
      %s34 = sadd.s32 1, %s29
      %p35 = scmp.ge.s32.totalorder %s34, 2
      %s36 = scalar_select %p35, 0, %s34
      %s37 = sadd.s32 1, %s28
      %s38 = scalar_select %p35, %s37, %s28
      %p39 = scmp.ge.s32.totalorder %s38, 1
      %s40 = scalar_select %p39, 0, %s38
      %s41 = ssub.s32 %s28, %s40
      %p42 = scmp.eq.s32.totalorder %s41, 0
      %s44 = sadd.s32 %s43, 1
      %s45 = scalar_select %p42, %s43, %s44
      %p48 = pneg %p42
      %p49 = scmp.eq.s32.totalorder %s21, 1
      %p50 = por %p48, %p49
      %p51 = scmp.ne.s32.totalorder %s43, %s46
      %p52 = scmp.eq.s32.totalorder %s21, 0
      %p53 = por %p51, %p52
      %p54 = scmp.ne.s32.totalorder %s43, %s46
      %p55 = scmp.eq.s32.totalorder %s26, 1
      %p56 = por %p54, %p55
      %p57 = scmp.ne.s32.totalorder %s46, %s47
      %p58 = scmp.eq.s32.totalorder %s26, 0
      %p59 = por %p57, %p58
      %p60 = scmp.ne.s32.totalorder %s46, %s47
      %p61 = scmp.eq.s32.totalorder %s27, 1
      %p62 = por %p60, %p61
      %p64 = scmp.ne.s32.totalorder %s47, %s63
      %p65 = scmp.eq.s32.totalorder %s27, 0
      %p66 = por %p64, %p65
      %s67 = ssub.s32 %s29, %s36
      %p68 = scmp.eq.s32.totalorder %s67, 0
      %s70 = sadd.s32 %s69, 1
      %s71 = scalar_select %p68, %s69, %s70
      %p74 = pneg %p68
      %p75 = scmp.eq.s32.totalorder %s21, 1
      %p76 = por %p74, %p75
      %p77 = scmp.ne.s32.totalorder %s69, %s72
      %p78 = scmp.eq.s32.totalorder %s21, 0
      %p79 = por %p77, %p78
      %p80 = scmp.ne.s32.totalorder %s69, %s72
      %p81 = scmp.eq.s32.totalorder %s26, 1
      %p82 = por %p80, %p81
      %p83 = scmp.ne.s32.totalorder %s72, %s73
      %p84 = scmp.eq.s32.totalorder %s26, 0
      %p85 = por %p83, %p84
      %p86 = scmp.ne.s32.totalorder %s72, %s73
      %p87 = scmp.eq.s32.totalorder %s27, 1
      %p88 = por %p86, %p87
      %p90 = scmp.ne.s32.totalorder %s73, %s89
      %p91 = scmp.eq.s32.totalorder %s27, 0
      %p92 = por %p90, %p91
      %s93 = ssub.s32 %s29, %s36
      %p94 = scmp.eq.s32.totalorder %s93, 0
      %s96 = sadd.s32 %s95, 1
      %s97 = scalar_select %p94, %s95, %s96
      %p100 = pneg %p94
      %p101 = scmp.eq.s32.totalorder %s21, 1
      %p102 = por %p100, %p101
      %p103 = scmp.ne.s32.totalorder %s95, %s98
      %p104 = scmp.eq.s32.totalorder %s21, 0
      %p105 = por %p103, %p104
      %p106 = scmp.ne.s32.totalorder %s95, %s98
      %p107 = scmp.eq.s32.totalorder %s26, 1
      %p108 = por %p106, %p107
      %p109 = scmp.ne.s32.totalorder %s98, %s99
      %p110 = scmp.eq.s32.totalorder %s26, 0
      %p111 = por %p109, %p110
      %p112 = scmp.ne.s32.totalorder %s98, %s99
      %p113 = scmp.eq.s32.totalorder %s27, 1
      %p114 = por %p112, %p113
      %p116 = scmp.ne.s32.totalorder %s99, %s115
      %p117 = scmp.eq.s32.totalorder %s27, 0
      %p118 = por %p116, %p117
      %s119 = ssub.s32 %s29, %s36
      %p120 = scmp.eq.s32.totalorder %s119, 0
      %s122 = sadd.s32 %s121, 1
      %s123 = scalar_select %p120, %s121, %s122
      %p126 = pneg %p120
      %p127 = scmp.eq.s32.totalorder %s21, 1
      %p128 = por %p126, %p127
      %p129 = scmp.ne.s32.totalorder %s121, %s124
      %p130 = scmp.eq.s32.totalorder %s21, 0
      %p131 = por %p129, %p130
      %p132 = scmp.ne.s32.totalorder %s121, %s124
      %p133 = scmp.eq.s32.totalorder %s26, 1
      %p134 = por %p132, %p133
      %p135 = scmp.ne.s32.totalorder %s124, %s125
      %p136 = scmp.eq.s32.totalorder %s26, 0
      %p137 = por %p135, %p136
      %p138 = scmp.ne.s32.totalorder %s124, %s125
      %p139 = scmp.eq.s32.totalorder %s27, 1
      %p140 = por %p138, %p139
      %p142 = scmp.ne.s32.totalorder %s125, %s141
      %p143 = scmp.eq.s32.totalorder %s27, 0
      %p144 = por %p142, %p143
      %s146 = sadd.s32 %s145, 1
      %p149 = scmp.eq.s32.totalorder %s21, 1
      %p150 = scmp.ne.s32.totalorder %s145, %s147
      %p151 = scmp.eq.s32.totalorder %s21, 0
      %p152 = por %p150, %p151
      %p153 = scmp.ne.s32.totalorder %s145, %s147
      %p154 = scmp.eq.s32.totalorder %s26, 1
      %p155 = por %p153, %p154
      %p156 = scmp.ne.s32.totalorder %s147, %s148
      %p157 = scmp.eq.s32.totalorder %s26, 0
      %p158 = por %p156, %p157
      %p159 = scmp.ne.s32.totalorder %s147, %s148
      %p160 = scmp.eq.s32.totalorder %s27, 1
      %p161 = por %p159, %p160
      %p163 = scmp.ne.s32.totalorder %s148, %s162
      %p164 = scmp.eq.s32.totalorder %s27, 0
      %p165 = por %p163, %p164
      %s167 = sadd.s32 %s166, 1
      %p170 = scmp.eq.s32.totalorder %s21, 1
      %p171 = scmp.ne.s32.totalorder %s166, %s168
      %p172 = scmp.eq.s32.totalorder %s21, 0
      %p173 = por %p171, %p172
      %p174 = scmp.ne.s32.totalorder %s166, %s168
      %p175 = scmp.eq.s32.totalorder %s26, 1
      %p176 = por %p174, %p175
      %p177 = scmp.ne.s32.totalorder %s168, %s169
      %p178 = scmp.eq.s32.totalorder %s26, 0
      %p179 = por %p177, %p178
      %p180 = scmp.ne.s32.totalorder %s168, %s169
      %p181 = scmp.eq.s32.totalorder %s27, 1
      %p182 = por %p180, %p181
      %p184 = scmp.ne.s32.totalorder %s169, %s183
      %p185 = scmp.eq.s32.totalorder %s27, 0
      %p186 = por %p184, %p185
      %s188 = sadd.s32 %s187, 1
      %p191 = scmp.eq.s32.totalorder %s21, 1
      %p192 = scmp.ne.s32.totalorder %s187, %s189
      %p193 = scmp.eq.s32.totalorder %s21, 0
      %p194 = por %p192, %p193
      %p195 = scmp.ne.s32.totalorder %s187, %s189
      %p196 = scmp.eq.s32.totalorder %s26, 1
      %p197 = por %p195, %p196
      %p198 = scmp.ne.s32.totalorder %s189, %s190
      %p199 = scmp.eq.s32.totalorder %s26, 0
      %p200 = por %p198, %p199
      %p201 = scmp.ne.s32.totalorder %s189, %s190
      %p202 = scmp.eq.s32.totalorder %s27, 1
      %p203 = por %p201, %p202
      %p205 = scmp.ne.s32.totalorder %s190, %s204
      %p206 = scmp.eq.s32.totalorder %s27, 0
      %p207 = por %p205, %p206
      %s208 = ssub.s32 %s28, %s40
      %p209 = scmp.eq.s32.totalorder %s208, 0
      %s211 = sadd.s32 %s210, 1
      %s212 = scalar_select %p209, %s210, %s211
      %p215 = pneg %p209
      %p216 = scmp.eq.s32.totalorder %s21, 1
      %p217 = por %p215, %p216
      %p218 = scmp.ne.s32.totalorder %s210, %s213
      %p219 = scmp.eq.s32.totalorder %s21, 0
      %p220 = por %p218, %p219
      %p221 = scmp.ne.s32.totalorder %s210, %s213
      %p222 = scmp.eq.s32.totalorder %s26, 1
      %p223 = por %p221, %p222
      %p224 = scmp.ne.s32.totalorder %s213, %s214
      %p225 = scmp.eq.s32.totalorder %s26, 0
      %p226 = por %p224, %p225
      %p227 = scmp.ne.s32.totalorder %s213, %s214
      %p228 = scmp.eq.s32.totalorder %s27, 1
      %p229 = por %p227, %p228
      %p231 = scmp.ne.s32.totalorder %s214, %s230
      %p232 = scmp.eq.s32.totalorder %s27, 0
      %p233 = por %p231, %p232
      %p234 = scmp.le.s32.totalorder 1, %s21
      %p235 = scmp.lt.s32.totalorder %s21, 3
      %p236 = pnand %p234, %p235
      %p237 = pneg %p236
      // Predicated region
      $region9: #{audio_mlp_pallas.1} parent=5 // pred_check
        _
      $region10: #{audio_mlp_pallas.1} parent=5 // pred_check_branch
        %239 = sbr.rel (%p236) target = $region12
      $region11: #{audio_mlp_pallas.1} parent=5 // pred_region
        %s240 = ssub.s32 %s21, 1
        // Predicated region
        $region13: #{audio_mlp_pallas.1} parent=11 // pred_check
          %p241 = pneg %p59
        $region14: #{audio_mlp_pallas.1} parent=11 // pred_check_branch
          %243 = sbr.rel (%p241) target = $region16
        $region15: #{audio_mlp_pallas.1} parent=11 // pred_region
          %s244 = smul.u32 2, %s30
          %246 = vsyncadd [#allocation4], 0
          %s247 = smul.addr %s244, 4
          %s248 = scalar_lea.hbm %s0, %s247
          %s249 = sshll.u32 %s248, 4
          %s250 = int_to_ptr.hbm [resolvable:$true] %s249
          %s251 = sshll.u32 [#allocation3], 4
          %s252 = int_to_ptr.vmem [resolvable:$true] %s251
          %257 = dma.hbm_to_vmem [thread:$0]  %s250, 128, %s252, [#allocation4], 64, 64, 4
        $region16: #{audio_mlp_pallas.1} parent=11 // pred_fallthru
          _
        // Predicated region
        $region17: #{audio_mlp_pallas.1} parent=11 // pred_check
          %p258 = pneg %p158
        $region18: #{audio_mlp_pallas.1} parent=11 // pred_check_branch
          %260 = sbr.rel (%p258) target = $region20
        $region19: #{audio_mlp_pallas.1} parent=11 // pred_region
          _
        $region20: #{audio_mlp_pallas.1} parent=11 // pred_fallthru
          _
        // Predicated region
        $region21: #{audio_mlp_pallas.1} parent=11 // pred_check
          %p261 = pneg %p179
        $region22: #{audio_mlp_pallas.1} parent=11 // pred_check_branch
          %263 = sbr.rel (%p261) target = $region24
        $region23: #{audio_mlp_pallas.1} parent=11 // pred_region
          %265 = vsyncadd [#allocation10], 0
          %s266 = sshll.u32 %s5, 4
          %s267 = int_to_ptr.hbm [resolvable:$true] %s266
          %s268 = sshll.u32 [#allocation11], 4
          %s269 = int_to_ptr.vmem [resolvable:$true] %s268
          %274 = dma.hbm_to_vmem [thread:$0]  %s267, 4096, %s269, [#allocation10], 128, 128, 8
        $region24: #{audio_mlp_pallas.1} parent=11 // pred_fallthru
          _
        // Predicated region
        $region25: #{audio_mlp_pallas.1} parent=11 // pred_check
          %p275 = pneg %p200
        $region26: #{audio_mlp_pallas.1} parent=11 // pred_check_branch
          %277 = sbr.rel (%p275) target = $region28
        $region27: #{audio_mlp_pallas.1} parent=11 // pred_region
          _
        $region28: #{audio_mlp_pallas.1} parent=11 // pred_fallthru
          _
      $region12: #{audio_mlp_pallas.1} parent=5 // pred_fallthru
        _
      %p278 = scmp.lt.s32.totalorder %s21, 2
      // Predicated region
      $region29: #{audio_mlp_pallas.1} parent=5 // pred_check
        %p279 = pneg %p278
      $region30: #{audio_mlp_pallas.1} parent=5 // pred_check_branch
        %281 = sbr.rel (%p279) target = $region32
      $region31: #{audio_mlp_pallas.1} parent=5 // pred_region
        // Predicated region
        $region33: #{audio_mlp_pallas.1} parent=31 // pred_check
          %p282 = pneg %p79
        $region34: #{audio_mlp_pallas.1} parent=31 // pred_check_branch
          %284 = sbr.rel (%p282) target = $region36
        $region35: #{audio_mlp_pallas.1} parent=31 // pred_region
          %s285 = sand.u32 %s21, 1
          %s286 = scalar_lea.sflag [#allocation7], %s285
          %s287 = sand.u32 %s69, 1
          %s288 = smul.addr %s287, 64
          %s289 = scalar_lea.vmem [#allocation6], %s288
          %291 = vsyncadd %s286, 0
          %s292 = smul.addr %s29, 4
          %s293 = scalar_lea.hbm %s1, %s292
          %s294 = sshll.u32 %s293, 4
          %s295 = int_to_ptr.hbm [resolvable:$true] %s294
          %s296 = sshll.u32 %s289, 4
          %s297 = int_to_ptr.vmem [resolvable:$true] %s296
          %302 = dma.hbm_to_vmem [thread:$0]  %s295, 1024, %s297, %s286, 128, 64, 4
        $region36: #{audio_mlp_pallas.1} parent=31 // pred_fallthru
          _
        // Predicated region
        $region37: #{audio_mlp_pallas.1} parent=31 // pred_check
          %p303 = pneg %p105
        $region38: #{audio_mlp_pallas.1} parent=31 // pred_check_branch
          %305 = sbr.rel (%p303) target = $region40
        $region39: #{audio_mlp_pallas.1} parent=31 // pred_region
          %s306 = sand.u32 %s21, 1
          %s307 = scalar_lea.sflag [#allocation7], %s306
          %s308 = sand.u32 %s95, 1
          %s309 = scalar_lea.vmem [#allocation8], %s308
          %311 = vsyncadd %s307, 0
          %s312 = scalar_lea.hbm %s2, %s29
          %s314 = sshll.u32 %s312, 4
          %s315 = int_to_ptr.hbm [resolvable:$true] %s314
          %s316 = sshll.u32 %s309, 4
          %s317 = int_to_ptr.vmem [resolvable:$true] %s316
          %319 = dma.hbm_to_vmem [thread:$0]  %s315, 16, %s317, %s307
        $region40: #{audio_mlp_pallas.1} parent=31 // pred_fallthru
          _
        // Predicated region
        $region41: #{audio_mlp_pallas.1} parent=31 // pred_check
          %p320 = pneg %p131
        $region42: #{audio_mlp_pallas.1} parent=31 // pred_check_branch
          %322 = sbr.rel (%p320) target = $region44
        $region43: #{audio_mlp_pallas.1} parent=31 // pred_region
          %s323 = sand.u32 %s21, 1
          %s324 = scalar_lea.sflag [#allocation10], %s323
          %s325 = sand.u32 %s121, 1
          %s326 = smul.addr %s325, 128
          %s327 = scalar_lea.vmem [#allocation9], %s326
          %s328 = smul.u32 16, %s29
          %330 = vsyncadd %s324, 0
          %s331 = smul.addr %s328, 2
          %s332 = smul.addr %s331, 4
          %s333 = scalar_lea.hbm %s3, %s332
          %s334 = sshll.u32 %s333, 4
          %s335 = int_to_ptr.hbm [resolvable:$true] %s334
          %s336 = sshll.u32 %s327, 4
          %s337 = int_to_ptr.vmem [resolvable:$true] %s336
          %342 = dma.hbm_to_vmem [thread:$0]  %s335, 2048, %s337, %s324, 128, 128, 8
        $region44: #{audio_mlp_pallas.1} parent=31 // pred_fallthru
          _
      $region32: #{audio_mlp_pallas.1} parent=5 // pred_fallthru
        _
      %p343 = scmp.le.s32.totalorder 1, %s21
      %p344 = scmp.lt.s32.totalorder %s21, 3
      %p345 = pnand %p343, %p344
      %p346 = pneg %p345
      // Predicated region
      $region45: #{audio_mlp_pallas.1} parent=5 // pred_check
        _
      $region46: #{audio_mlp_pallas.1} parent=5 // pred_check_branch
        %348 = sbr.rel (%p345) target = $region48
      $region47: #{audio_mlp_pallas.1} parent=5 // pred_region
        %s349 = ssub.s32 %s21, 1
        // Predicated region
        $region49: #{audio_mlp_pallas.1} parent=47 // pred_check
          %p350 = pneg %p59
        $region50: #{audio_mlp_pallas.1} parent=47 // pred_check_branch
          %352 = sbr.rel (%p350) target = $region52
        $region51: #{audio_mlp_pallas.1} parent=47 // pred_region
          %354 = dma.done [#allocation4], 128
        $region52: #{audio_mlp_pallas.1} parent=47 // pred_fallthru
          _
        %s355 = sand.u32 %s26, 1
        %s356 = scalar_lea.sflag [#allocation7], %s355
        %s357 = sand.u32 %s72, 1
        %s358 = smul.addr %s357, 64
        %s359 = scalar_lea.vmem [#allocation6], %s358
        // Predicated region
        $region53: #{audio_mlp_pallas.1} parent=47 // pred_check
          %p360 = pneg %p85
        $region54: #{audio_mlp_pallas.1} parent=47 // pred_check_branch
          %362 = sbr.rel (%p360) target = $region56
        $region55: #{audio_mlp_pallas.1} parent=47 // pred_region
          %364 = dma.done %s356, 1024
        $region56: #{audio_mlp_pallas.1} parent=47 // pred_fallthru
          _
        %s365 = sand.u32 %s26, 1
        %s366 = scalar_lea.sflag [#allocation7], %s365
        %s367 = sand.u32 %s98, 1
        %s368 = scalar_lea.vmem [#allocation8], %s367
        // Predicated region
        $region57: #{audio_mlp_pallas.1} parent=47 // pred_check
          %p369 = pneg %p111
        $region58: #{audio_mlp_pallas.1} parent=47 // pred_check_branch
          %371 = sbr.rel (%p369) target = $region60
        $region59: #{audio_mlp_pallas.1} parent=47 // pred_region
          %373 = dma.done %s366, 16
        $region60: #{audio_mlp_pallas.1} parent=47 // pred_fallthru
          _
        %s374 = sand.u32 %s26, 1
        %s375 = scalar_lea.sflag [#allocation10], %s374
        %s376 = sand.u32 %s124, 1
        %s377 = smul.addr %s376, 128
        %s378 = scalar_lea.vmem [#allocation9], %s377
        // Predicated region
        $region61: #{audio_mlp_pallas.1} parent=47 // pred_check
          %p379 = pneg %p137
        $region62: #{audio_mlp_pallas.1} parent=47 // pred_check_branch
          %381 = sbr.rel (%p379) target = $region64
        $region63: #{audio_mlp_pallas.1} parent=47 // pred_region
          %383 = dma.done %s375, 2048
        $region64: #{audio_mlp_pallas.1} parent=47 // pred_fallthru
          _
        // Predicated region
        $region65: #{audio_mlp_pallas.1} parent=47 // pred_check
          %p384 = pneg %p179
        $region66: #{audio_mlp_pallas.1} parent=47 // pred_check_branch
          %386 = sbr.rel (%p384) target = $region68
        $region67: #{audio_mlp_pallas.1} parent=47 // pred_region
          %388 = dma.done [#allocation10], 4096
        $region68: #{audio_mlp_pallas.1} parent=47 // pred_fallthru
          _
        %p389 = pneg %p59
        %p390 = pneg %p56
        %s391 = sand.u32 %s26, 1
        %s392 = scalar_lea.sflag [#allocation7], %s391
        %s393 = sand.u32 %s72, 1
        %s394 = smul.addr %s393, 64
        %s395 = scalar_lea.vmem [#allocation6], %s394
        %p396 = pneg %p85
        %p397 = pneg %p82
        %s398 = sand.u32 %s26, 1
        %s399 = scalar_lea.sflag [#allocation7], %s398
        %s400 = sand.u32 %s98, 1
        %s401 = scalar_lea.vmem [#allocation8], %s400
        %p402 = pneg %p111
        %p403 = pneg %p108
        %s404 = sand.u32 %s26, 1
        %s405 = scalar_lea.sflag [#allocation10], %s404
        %s406 = sand.u32 %s124, 1
        %s407 = smul.addr %s406, 128
        %s408 = scalar_lea.vmem [#allocation9], %s407
        %p409 = pneg %p137
        %p410 = pneg %p134
        %p411 = pneg %p158
        %p412 = pneg %p155
        %p413 = pneg %p179
        %p414 = pneg %p176
        %p415 = pneg %p200
        %p416 = pneg %p197
        %p417 = pneg %p226
        %p418 = pneg %p223
        %s419 = smul.u32 2, %s30
        %s420 = smul.u32 16, %s31
        %s421 = smul.u32 2, %s30
        %p422 = scmp.eq.s32.totalorder %s31, 0
        // Predicated region
        $region69: #{audio_mlp_pallas.1} parent=47 // pred_check
          %p423 = pneg %p422
        $region70: #{audio_mlp_pallas.1} parent=47 // pred_check_branch
          %425 = sbr.rel (%p423) target = $region72
        $region71: #{audio_mlp_pallas.1} parent=47 // pred_region
          %426 = vst [vmem:[#allocation2] sm:$0xff] 0.0
          %427 = vst [vmem:[#allocation2 + $0x8] sm:$0xff] 0.0
          %428 = vst [vmem:[#allocation2 + $0x10] sm:$0xff] 0.0
          %429 = vst [vmem:[#allocation2 + $0x18] sm:$0xff] 0.0
        $region72: #{audio_mlp_pallas.1} parent=47 // pred_fallthru
          _
        %v430 = vld [vmem:[#allocation3] sm:$0xf]
        %v431 = vld [vmem:[#allocation3 + $0x4] sm:$0xf]
        %v432 = vld [vmem:[%s359] sm:$0xf]
        %v433 = vld [vmem:[%s359 + $0x4] sm:$0xf]
        %v434 = vld [vmem:[%s359 + $0x8] sm:$0xf]
        %v435 = vld [vmem:[%s359 + $0xc] sm:$0xf]
        %v436 = vld [vmem:[%s359 + $0x10] sm:$0xf]
        %v437 = vld [vmem:[%s359 + $0x14] sm:$0xf]
        %v438 = vld [vmem:[%s359 + $0x18] sm:$0xf]
        %v439 = vld [vmem:[%s359 + $0x1c] sm:$0xf]
        %v440 = vld [vmem:[%s359 + $0x20] sm:$0xf]
        %v441 = vld [vmem:[%s359 + $0x24] sm:$0xf]
        %v442 = vld [vmem:[%s359 + $0x28] sm:$0xf]
        %v443 = vld [vmem:[%s359 + $0x2c] sm:$0xf]
        %v444 = vld [vmem:[%s359 + $0x30] sm:$0xf]
        %v445 = vld [vmem:[%s359 + $0x34] sm:$0xf]
        %v446 = vld [vmem:[%s359 + $0x38] sm:$0xf]
        %v447 = vld [vmem:[%s359 + $0x3c] sm:$0xf]
        %v448 = vld [vmem:[%s368] sm:$0x1]
        %v450 = vperm.slane %v448, 0
        %v454 = vunpack.c.l.b16 %v430
        %v455 = vunpack.c.l.b16 %v431
        %v456 = vpack.c.b16 %v455, %v454
        %v474 = vunpack.c.l.b16 %v432
        %v475 = vunpack.c.l.b16 %v433
        %v476 = vunpack.c.l.b16 %v434
        %v477 = vunpack.c.l.b16 %v435
        %v478 = vunpack.c.l.b16 %v436
        %v479 = vunpack.c.l.b16 %v437
        %v480 = vunpack.c.l.b16 %v438
        %v481 = vunpack.c.l.b16 %v439
        %v482 = vunpack.c.l.b16 %v440
        %v483 = vunpack.c.l.b16 %v441
        %v484 = vunpack.c.l.b16 %v442
        %v485 = vunpack.c.l.b16 %v443
        %v486 = vunpack.c.l.b16 %v444
        %v487 = vunpack.c.l.b16 %v445
        %v488 = vunpack.c.l.b16 %v446
        %v489 = vunpack.c.l.b16 %v447
        %v490 = vpack.c.b16 %v475, %v474
        %v491 = vpack.c.b16 %v477, %v476
        %v492 = vpack.c.b16 %v479, %v478
        %v493 = vpack.c.b16 %v481, %v480
        %v494 = vpack.c.b16 %v483, %v482
        %v495 = vpack.c.b16 %v485, %v484
        %v496 = vpack.c.b16 %v487, %v486
        %v497 = vpack.c.b16 %v489, %v488
        %506 = vmatpush.bf16.msra.mxu0 %v497
        %507 = vmatpush.bf16.msra.mxu0 %v496
        %508 = vmatpush.bf16.msra.mxu0 %v495
        %509 = vmatpush.bf16.msra.mxu0 %v494
        %510 = vmatpush.bf16.msra.mxu0 %v493
        %511 = vmatpush.bf16.msra.mxu0 %v492
        %512 = vmatpush.bf16.msra.mxu0 %v491
        %513 = vmatpush.bf16.msra.mxu0 %v490
        %514 = vmatmul.bf16.gmra.mxu0 %v456
        %v515 = vpop.f32.mrf.mxu0
        %v516 = vadd.f32 %v450, %v515
        %v517 = vpop.f32.mrf.mxu0
        %v518 = vadd.f32 %v450, %v517
        %519 = vdwg.mxu0
        %v520 = vmax.f32 %v516, 0.0
        %v521 = vmax.f32 %v518, 0.0
        %v522 = vld [vmem:[#allocation2] sm:$0xff]
        %v523 = vld [vmem:[#allocation2 + $0x8] sm:$0xff]
        %v524 = vld [vmem:[#allocation2 + $0x10] sm:$0xff]
        %v525 = vld [vmem:[#allocation2 + $0x18] sm:$0xff]
        %v526 = vpack.c.bf16 %v521, %v520
        %v527 = vld [vmem:[%s378] sm:$0xff]
        %v528 = vld [vmem:[%s378 + $0x8] sm:$0xff]
        %v529 = vld [vmem:[%s378 + $0x10] sm:$0xff]
        %v530 = vld [vmem:[%s378 + $0x18] sm:$0xff]
        %v531 = vld [vmem:[%s378 + $0x20] sm:$0xff]
        %v532 = vld [vmem:[%s378 + $0x28] sm:$0xff]
        %v533 = vld [vmem:[%s378 + $0x30] sm:$0xff]
        %v534 = vld [vmem:[%s378 + $0x38] sm:$0xff]
        %v535 = vld [vmem:[%s378 + $0x40] sm:$0xff]
        %v536 = vld [vmem:[%s378 + $0x48] sm:$0xff]
        %v537 = vld [vmem:[%s378 + $0x50] sm:$0xff]
        %v538 = vld [vmem:[%s378 + $0x58] sm:$0xff]
        %v539 = vld [vmem:[%s378 + $0x60] sm:$0xff]
        %v540 = vld [vmem:[%s378 + $0x68] sm:$0xff]
        %v541 = vld [vmem:[%s378 + $0x70] sm:$0xff]
        %v542 = vld [vmem:[%s378 + $0x78] sm:$0xff]
        %v559 = vunpack.c.l.b16 %v527
        %v560 = vunpack.c.h.b16 %v527
        %v561 = vunpack.c.l.b16 %v528
        %v562 = vunpack.c.h.b16 %v528
        %v563 = vunpack.c.l.b16 %v529
        %v564 = vunpack.c.h.b16 %v529
        %v565 = vunpack.c.l.b16 %v530
        %v566 = vunpack.c.h.b16 %v530
        %v567 = vunpack.c.l.b16 %v531
        %v568 = vunpack.c.h.b16 %v531
        %v569 = vunpack.c.l.b16 %v532
        %v570 = vunpack.c.h.b16 %v532
        %v571 = vunpack.c.l.b16 %v533
        %v572 = vunpack.c.h.b16 %v533
        %v573 = vunpack.c.l.b16 %v534
        %v574 = vunpack.c.h.b16 %v534
        %v575 = vunpack.c.l.b16 %v535
        %v576 = vunpack.c.h.b16 %v535
        %v577 = vunpack.c.l.b16 %v536
        %v578 = vunpack.c.h.b16 %v536
        %v579 = vunpack.c.l.b16 %v537
        %v580 = vunpack.c.h.b16 %v537
        %v581 = vunpack.c.l.b16 %v538
        %v582 = vunpack.c.h.b16 %v538
        %v583 = vunpack.c.l.b16 %v539
        %v584 = vunpack.c.h.b16 %v539
        %v585 = vunpack.c.l.b16 %v540
        %v586 = vunpack.c.h.b16 %v540
        %v587 = vunpack.c.l.b16 %v541
        %v588 = vunpack.c.h.b16 %v541
        %v589 = vunpack.c.l.b16 %v542
        %v590 = vunpack.c.h.b16 %v542
        %v591 = vpack.c.b16 %v561, %v559
        %v592 = vpack.c.b16 %v562, %v560
        %v593 = vpack.c.b16 %v565, %v563
        %v594 = vpack.c.b16 %v566, %v564
        %v595 = vpack.c.b16 %v569, %v567
        %v596 = vpack.c.b16 %v570, %v568
        %v597 = vpack.c.b16 %v573, %v571
        %v598 = vpack.c.b16 %v574, %v572
        %v599 = vpack.c.b16 %v577, %v575
        %v600 = vpack.c.b16 %v578, %v576
        %v601 = vpack.c.b16 %v581, %v579
        %v602 = vpack.c.b16 %v582, %v580
        %v603 = vpack.c.b16 %v585, %v583
        %v604 = vpack.c.b16 %v586, %v584
        %v605 = vpack.c.b16 %v589, %v587
        %v606 = vpack.c.b16 %v590, %v588
        %623 = vmatpush.bf16.msra.mxu0 %v605
        %624 = vmatpush.bf16.msra.mxu0 %v603
        %625 = vmatpush.bf16.msra.mxu0 %v601
        %626 = vmatpush.bf16.msra.mxu0 %v599
        %627 = vmatpush.bf16.msra.mxu0 %v597
        %628 = vmatpush.bf16.msra.mxu0 %v595
        %629 = vmatpush.bf16.msra.mxu0 %v593
        %630 = vmatpush.bf16.msra.mxu0 %v591
        %631 = vmatmul.bf16.gmra.mxu0 %v526
        %v632 = vpop.f32.mrf.mxu0
        %v633 = vadd.f32 0.0, %v632
        %v634 = vpop.f32.mrf.mxu0
        %v635 = vadd.f32 0.0, %v634
        %636 = vdwg.mxu0
        %637 = vmatpush.bf16.msra.mxu0 %v606
        %638 = vmatpush.bf16.msra.mxu0 %v604
        %639 = vmatpush.bf16.msra.mxu0 %v602
        %640 = vmatpush.bf16.msra.mxu0 %v600
        %641 = vmatpush.bf16.msra.mxu0 %v598
        %642 = vmatpush.bf16.msra.mxu0 %v596
        %643 = vmatpush.bf16.msra.mxu0 %v594
        %644 = vmatpush.bf16.msra.mxu0 %v592
        %645 = vmatmul.bf16.gmra.mxu0 %v526
        %v646 = vpop.f32.mrf.mxu0
        %v647 = vadd.f32 0.0, %v646
        %v648 = vpop.f32.mrf.mxu0
        %v649 = vadd.f32 0.0, %v648
        %650 = vdwg.mxu0
        %v651 = vadd.f32 %v522, %v633
        %v652 = vadd.f32 %v523, %v647
        %v653 = vadd.f32 %v524, %v635
        %v654 = vadd.f32 %v525, %v649
        %655 = vst [vmem:[#allocation2] sm:$0xff] %v651
        %656 = vst [vmem:[#allocation2 + $0x8] sm:$0xff] %v652
        %657 = vst [vmem:[#allocation2 + $0x10] sm:$0xff] %v653
        %658 = vst [vmem:[#allocation2 + $0x18] sm:$0xff] %v654
        %p659 = scmp.eq.s32.totalorder %s31, 1
        // Predicated region
        $region73: #{audio_mlp_pallas.1} parent=47 // pred_check
          %p660 = pneg %p659
        $region74: #{audio_mlp_pallas.1} parent=47 // pred_check_branch
          %662 = sbr.rel (%p660) target = $region76
        $region75: #{audio_mlp_pallas.1} parent=47 // pred_region
          %v663 = vld [vmem:[#allocation2] sm:$0xff]
          %v664 = vld [vmem:[#allocation2 + $0x8] sm:$0xff]
          %v665 = vld [vmem:[#allocation2 + $0x10] sm:$0xff]
          %v666 = vld [vmem:[#allocation2 + $0x18] sm:$0xff]
          %v667 = vld [vmem:[%s4] sm:$0x3]
          %v669 = vperm.slane %v667, 0
          %v670 = vperm.slane %v667, 1
          %v673 = vadd.f32 %v663, %v669
          %v674 = vadd.f32 %v664, %v670
          %v675 = vadd.f32 %v665, %v669
          %v676 = vadd.f32 %v666, %v670
          %v677 = vmax.f32 %v673, 0.0
          %v678 = vmax.f32 %v674, 0.0
          %v679 = vmax.f32 %v675, 0.0
          %v680 = vmax.f32 %v676, 0.0
          %v681 = vpack.c.bf16 %v679, %v677
          %v682 = vpack.c.bf16 %v680, %v678
          %v683 = vld [vmem:[#allocation11] sm:$0xff]
          %v684 = vld [vmem:[#allocation11 + $0x8] sm:$0xff]
          %v685 = vld [vmem:[#allocation11 + $0x10] sm:$0xff]
          %v686 = vld [vmem:[#allocation11 + $0x18] sm:$0xff]
          %v687 = vld [vmem:[#allocation11 + $0x20] sm:$0xff]
          %v688 = vld [vmem:[#allocation11 + $0x28] sm:$0xff]
          %v689 = vld [vmem:[#allocation11 + $0x30] sm:$0xff]
          %v690 = vld [vmem:[#allocation11 + $0x38] sm:$0xff]
          %v691 = vld [vmem:[#allocation11 + $0x40] sm:$0xff]
          %v692 = vld [vmem:[#allocation11 + $0x48] sm:$0xff]
          %v693 = vld [vmem:[#allocation11 + $0x50] sm:$0xff]
          %v694 = vld [vmem:[#allocation11 + $0x58] sm:$0xff]
          %v695 = vld [vmem:[#allocation11 + $0x60] sm:$0xff]
          %v696 = vld [vmem:[#allocation11 + $0x68] sm:$0xff]
          %v697 = vld [vmem:[#allocation11 + $0x70] sm:$0xff]
          %v698 = vld [vmem:[#allocation11 + $0x78] sm:$0xff]
          %v699 = vld [vmem:[#allocation11 + $0x80] sm:$0xff]
          %v700 = vld [vmem:[#allocation11 + $0x88] sm:$0xff]
          %v701 = vld [vmem:[#allocation11 + $0x90] sm:$0xff]
          %v702 = vld [vmem:[#allocation11 + $0x98] sm:$0xff]
          %v703 = vld [vmem:[#allocation11 + $0xa0] sm:$0xff]
          %v704 = vld [vmem:[#allocation11 + $0xa8] sm:$0xff]
          %v705 = vld [vmem:[#allocation11 + $0xb0] sm:$0xff]
          %v706 = vld [vmem:[#allocation11 + $0xb8] sm:$0xff]
          %v707 = vld [vmem:[#allocation11 + $0xc0] sm:$0xff]
          %v708 = vld [vmem:[#allocation11 + $0xc8] sm:$0xff]
          %v709 = vld [vmem:[#allocation11 + $0xd0] sm:$0xff]
          %v710 = vld [vmem:[#allocation11 + $0xd8] sm:$0xff]
          %v711 = vld [vmem:[#allocation11 + $0xe0] sm:$0xff]
          %v712 = vld [vmem:[#allocation11 + $0xe8] sm:$0xff]
          %v713 = vld [vmem:[#allocation11 + $0xf0] sm:$0xff]
          %v714 = vld [vmem:[#allocation11 + $0xf8] sm:$0xff]
          %v715 = vld [vmem:[%s6] sm:$0x3]
          %v717 = vperm.slane %v715, 0
          %v718 = vperm.slane %v715, 1
          %v753 = vunpack.c.l.b16 %v683
          %v754 = vunpack.c.h.b16 %v683
          %v755 = vunpack.c.l.b16 %v684
          %v756 = vunpack.c.h.b16 %v684
          %v757 = vunpack.c.l.b16 %v685
          %v758 = vunpack.c.h.b16 %v685
          %v759 = vunpack.c.l.b16 %v686
          %v760 = vunpack.c.h.b16 %v686
          %v761 = vunpack.c.l.b16 %v687
          %v762 = vunpack.c.h.b16 %v687
          %v763 = vunpack.c.l.b16 %v688
          %v764 = vunpack.c.h.b16 %v688
          %v765 = vunpack.c.l.b16 %v689
          %v766 = vunpack.c.h.b16 %v689
          %v767 = vunpack.c.l.b16 %v690
          %v768 = vunpack.c.h.b16 %v690
          %v769 = vunpack.c.l.b16 %v691
          %v770 = vunpack.c.h.b16 %v691
          %v771 = vunpack.c.l.b16 %v692
          %v772 = vunpack.c.h.b16 %v692
          %v773 = vunpack.c.l.b16 %v693
          %v774 = vunpack.c.h.b16 %v693
          %v775 = vunpack.c.l.b16 %v694
          %v776 = vunpack.c.h.b16 %v694
          %v777 = vunpack.c.l.b16 %v695
          %v778 = vunpack.c.h.b16 %v695
          %v779 = vunpack.c.l.b16 %v696
          %v780 = vunpack.c.h.b16 %v696
          %v781 = vunpack.c.l.b16 %v697
          %v782 = vunpack.c.h.b16 %v697
          %v783 = vunpack.c.l.b16 %v698
          %v784 = vunpack.c.h.b16 %v698
          %v785 = vunpack.c.l.b16 %v699
          %v786 = vunpack.c.h.b16 %v699
          %v787 = vunpack.c.l.b16 %v700
          %v788 = vunpack.c.h.b16 %v700
          %v789 = vunpack.c.l.b16 %v701
          %v790 = vunpack.c.h.b16 %v701
          %v791 = vunpack.c.l.b16 %v702
          %v792 = vunpack.c.h.b16 %v702
          %v793 = vunpack.c.l.b16 %v703
          %v794 = vunpack.c.h.b16 %v703
          %v795 = vunpack.c.l.b16 %v704
          %v796 = vunpack.c.h.b16 %v704
          %v797 = vunpack.c.l.b16 %v705
          %v798 = vunpack.c.h.b16 %v705
          %v799 = vunpack.c.l.b16 %v706
          %v800 = vunpack.c.h.b16 %v706
          %v801 = vunpack.c.l.b16 %v707
          %v802 = vunpack.c.h.b16 %v707
          %v803 = vunpack.c.l.b16 %v708
          %v804 = vunpack.c.h.b16 %v708
          %v805 = vunpack.c.l.b16 %v709
          %v806 = vunpack.c.h.b16 %v709
          %v807 = vunpack.c.l.b16 %v710
          %v808 = vunpack.c.h.b16 %v710
          %v809 = vunpack.c.l.b16 %v711
          %v810 = vunpack.c.h.b16 %v711
          %v811 = vunpack.c.l.b16 %v712
          %v812 = vunpack.c.h.b16 %v712
          %v813 = vunpack.c.l.b16 %v713
          %v814 = vunpack.c.h.b16 %v713
          %v815 = vunpack.c.l.b16 %v714
          %v816 = vunpack.c.h.b16 %v714
          %v817 = vpack.c.b16 %v755, %v753
          %v818 = vpack.c.b16 %v756, %v754
          %v819 = vpack.c.b16 %v759, %v757
          %v820 = vpack.c.b16 %v760, %v758
          %v821 = vpack.c.b16 %v763, %v761
          %v822 = vpack.c.b16 %v764, %v762
          %v823 = vpack.c.b16 %v767, %v765
          %v824 = vpack.c.b16 %v768, %v766
          %v825 = vpack.c.b16 %v771, %v769
          %v826 = vpack.c.b16 %v772, %v770
          %v827 = vpack.c.b16 %v775, %v773
          %v828 = vpack.c.b16 %v776, %v774
          %v829 = vpack.c.b16 %v779, %v777
          %v830 = vpack.c.b16 %v780, %v778
          %v831 = vpack.c.b16 %v783, %v781
          %v832 = vpack.c.b16 %v784, %v782
          %v833 = vpack.c.b16 %v787, %v785
          %v834 = vpack.c.b16 %v788, %v786
          %v835 = vpack.c.b16 %v791, %v789
          %v836 = vpack.c.b16 %v792, %v790
          %v837 = vpack.c.b16 %v795, %v793
          %v838 = vpack.c.b16 %v796, %v794
          %v839 = vpack.c.b16 %v799, %v797
          %v840 = vpack.c.b16 %v800, %v798
          %v841 = vpack.c.b16 %v803, %v801
          %v842 = vpack.c.b16 %v804, %v802
          %v843 = vpack.c.b16 %v807, %v805
          %v844 = vpack.c.b16 %v808, %v806
          %v845 = vpack.c.b16 %v811, %v809
          %v846 = vpack.c.b16 %v812, %v810
          %v847 = vpack.c.b16 %v815, %v813
          %v848 = vpack.c.b16 %v816, %v814
          %881 = vmatpush.bf16.msra.mxu0 %v831
          %882 = vmatpush.bf16.msra.mxu0 %v829
          %883 = vmatpush.bf16.msra.mxu0 %v827
          %884 = vmatpush.bf16.msra.mxu0 %v825
          %885 = vmatpush.bf16.msra.mxu0 %v823
          %886 = vmatpush.bf16.msra.mxu0 %v821
          %887 = vmatpush.bf16.msra.mxu0 %v819
          %888 = vmatpush.bf16.msra.mxu0 %v817
          %889 = vmatmul.bf16.gmra.mxu0 %v681
          %v890 = vpop.f32.mrf.mxu0
          %v891 = vadd.f32 %v717, %v890
          %v892 = vpop.f32.mrf.mxu0
          %v893 = vadd.f32 %v717, %v892
          %894 = vdwg.mxu0
          %895 = vmatpush.bf16.msra.mxu0 %v847
          %896 = vmatpush.bf16.msra.mxu0 %v845
          %897 = vmatpush.bf16.msra.mxu0 %v843
          %898 = vmatpush.bf16.msra.mxu0 %v841
          %899 = vmatpush.bf16.msra.mxu0 %v839
          %900 = vmatpush.bf16.msra.mxu0 %v837
          %901 = vmatpush.bf16.msra.mxu0 %v835
          %902 = vmatpush.bf16.msra.mxu0 %v833
          %903 = vmatmul.bf16.gmra.mxu0 %v682
          %v904 = vpop.f32.mrf.mxu0
          %v905 = vadd.f32 %v891, %v904
          %v906 = vpop.f32.mrf.mxu0
          %v907 = vadd.f32 %v893, %v906
          %908 = vdwg.mxu0
          %909 = vmatpush.bf16.msra.mxu0 %v832
          %910 = vmatpush.bf16.msra.mxu0 %v830
          %911 = vmatpush.bf16.msra.mxu0 %v828
          %912 = vmatpush.bf16.msra.mxu0 %v826
          %913 = vmatpush.bf16.msra.mxu0 %v824
          %914 = vmatpush.bf16.msra.mxu0 %v822
          %915 = vmatpush.bf16.msra.mxu0 %v820
          %916 = vmatpush.bf16.msra.mxu0 %v818
          %917 = vmatmul.bf16.gmra.mxu0 %v681
          %v918 = vpop.f32.mrf.mxu0
          %v919 = vadd.f32 %v718, %v918
          %v920 = vpop.f32.mrf.mxu0
          %v921 = vadd.f32 %v718, %v920
          %922 = vdwg.mxu0
          %923 = vmatpush.bf16.msra.mxu0 %v848
          %924 = vmatpush.bf16.msra.mxu0 %v846
          %925 = vmatpush.bf16.msra.mxu0 %v844
          %926 = vmatpush.bf16.msra.mxu0 %v842
          %927 = vmatpush.bf16.msra.mxu0 %v840
          %928 = vmatpush.bf16.msra.mxu0 %v838
          %929 = vmatpush.bf16.msra.mxu0 %v836
          %930 = vmatpush.bf16.msra.mxu0 %v834
          %931 = vmatmul.bf16.gmra.mxu0 %v682
          %v932 = vpop.f32.mrf.mxu0
          %v933 = vadd.f32 %v919, %v932
          %v934 = vpop.f32.mrf.mxu0
          %v935 = vadd.f32 %v921, %v934
          %936 = vdwg.mxu0
          %v937 = vpack.c.bf16 %v933, %v905
          %v938 = vpack.c.bf16 %v935, %v907
          %939 = vst [vmem:[#allocation12] sm:$0xff] %v937
          %940 = vst [vmem:[#allocation12 + $0x8] sm:$0xff] %v938
        $region76: #{audio_mlp_pallas.1} parent=47 // pred_fallthru
          _
        // Predicated region
        $region77: #{audio_mlp_pallas.1} parent=47 // pred_check
          %p941 = pneg %p223
        $region78: #{audio_mlp_pallas.1} parent=47 // pred_check_branch
          %943 = sbr.rel (%p941) target = $region80
        $region79: #{audio_mlp_pallas.1} parent=47 // pred_region
          %s944 = smul.u32 2, %s30
          %946 = vsyncadd [#allocation5], 0
          %s947 = smul.addr %s944, 2
          %s948 = smul.addr %s947, 4
          %s949 = scalar_lea.hbm %s7, %s948
          %s950 = sshll.u32 [#allocation12], 4
          %s951 = int_to_ptr.vmem [resolvable:$true] %s950
          %s952 = sshll.u32 %s949, 4
          %s953 = int_to_ptr.hbm [resolvable:$true] %s952
          %958 = dma.vmem_to_hbm [thread:$0]  %s951, 256, %s953, [#allocation5], 128, 128, 8
        $region80: #{audio_mlp_pallas.1} parent=47 // pred_fallthru
          _
        // Predicated region
        $region81: #{audio_mlp_pallas.1} parent=47 // pred_check
          %p959 = pneg %p223
        $region82: #{audio_mlp_pallas.1} parent=47 // pred_check_branch
          %961 = sbr.rel (%p959) target = $region84
        $region83: #{audio_mlp_pallas.1} parent=47 // pred_region
          %963 = dma.done [#allocation5], 256
        $region84: #{audio_mlp_pallas.1} parent=47 // pred_fallthru
          _
      $region48: #{audio_mlp_pallas.1} parent=5 // pred_fallthru
        _
      %p964 = scmp.le.s32.totalorder 2, %s21
      // Predicated region
      $region85: #{audio_mlp_pallas.1} parent=5 // pred_check
        %p965 = pneg %p964
      $region86: #{audio_mlp_pallas.1} parent=5 // pred_check_branch
        %967 = sbr.rel (%p965) target = $region88
      $region87: #{audio_mlp_pallas.1} parent=5 // pred_region
        %s968 = ssub.s32 %s21, 2
      $region88: #{audio_mlp_pallas.1} parent=5 // pred_fallthru
        _
    $region6: #{audio_mlp_pallas.1} parent=1 // loop_footer
      %s25 = sadd.s32 1, %s21
    $region7: #{audio_mlp_pallas.1} parent=1 // loop_footer_branch
      %20 = sbr.rel target = $region3
    $region8: #{audio_mlp_pallas.1} parent=1 // loop_exit
      _
    %969 = vsyncpa [#allocation4], 1
    %s970 = scalar_lea.sflag [#allocation4], 1
    %971 = vsyncpa %s970, 1
    %972 = vsyncpa [#allocation7], 1
    %s973 = scalar_lea.sflag [#allocation7], 1
    %974 = vsyncpa %s973, 1
    %975 = vsyncpa [#allocation10], 1
    %s976 = scalar_lea.sflag [#allocation10], 1
    %977 = vsyncpa %s976, 1
    %978 = vsyncpa [#allocation5], 1
    %s979 = scalar_lea.sflag [#allocation5], 1
    %980 = vsyncpa %s979, 1

</llo_original>
